<compile_context>
chip_gen: v5e
topology: v5e:2x2
jax: 0.10.0
libtpu: 0.0.40
codegen_flags: <defaults>
</compile_context>

<pallas_src>
import jax
import jax.numpy as jnp
from jax.experimental import pallas as pl
from jax.experimental.pallas import tpu as pltpu


def bnn_conv1d_kernel(x_ref, w1_ref, b1_ref, w2_ref, b2_ref, wfc_ref, bfc_ref,
                      o_ref):
    # x_ref:   (Bblk, T+2, C_in)  time-padded input, matmul dtype
    # w1_ref:  (3, C_in, 32)      matmul dtype     b1_ref: (1, 32) f32
    # w2_ref:  (3, 32, 64)        matmul dtype     b2_ref: (1, 64) f32
    # wfc_ref: (1, 64) f32        bfc_ref: (1, 1) f32 scalar in SMEM
    # o_ref:   (1, 1, Bblk) f32   batch-on-lanes output block
    bblk, Tp2, c_in = x_ref.shape
    T = Tp2 - 2
    C1 = w1_ref.shape[2]
    C2 = w2_ref.shape[2]
    M = bblk * T
    mm_dtype = w2_ref.dtype
    inv_T = 1.0 / T

    # ---- conv1: three accumulated tap matmuls (M rows, K = C_in), f32 acc ----
    h1 = jnp.dot(x_ref[:, 0:T, :].reshape(M, c_in), w1_ref[0],
                 preferred_element_type=jnp.float32)
    h1 = h1 + jnp.dot(x_ref[:, 1:T + 1, :].reshape(M, c_in), w1_ref[1],
                      preferred_element_type=jnp.float32)
    h1 = h1 + jnp.dot(x_ref[:, 2:T + 2, :].reshape(M, c_in), w1_ref[2],
                      preferred_element_type=jnp.float32)
    h1 = jnp.maximum(h1 + b1_ref[...], 0.0)            # (M, 32) f32
    # drop1: identity (eval mode)

    # ---- conv2: time-shifted taps via XLU rolls + boundary mask, then three
    #      accumulated matmuls (no VMEM scratch round trip, no lane concat) ----
    row = jax.lax.broadcasted_iota(jnp.int32, (M, C1), 0)
    t_mod = row % T                                     # position within sequence
    zeros = jnp.zeros_like(h1)
    h1_prev = jnp.where(t_mod == 0, zeros,
                        pltpu.roll(h1, shift=1, axis=0))      # h1[t-1], 0 at t=0
    h1_next = jnp.where(t_mod == T - 1, zeros,
                        pltpu.roll(h1, shift=M - 1, axis=0))  # h1[t+1], 0 at t=T-1

    h2 = jnp.dot(h1_prev.astype(mm_dtype), w2_ref[0],
                 preferred_element_type=jnp.float32)
    h2 = h2 + jnp.dot(h1.astype(mm_dtype), w2_ref[1],
                      preferred_element_type=jnp.float32)
    h2 = h2 + jnp.dot(h1_next.astype(mm_dtype), w2_ref[2],
                      preferred_element_type=jnp.float32)
    h2 = jnp.maximum(h2 + b2_ref[...], 0.0)             # (M, 64) f32
    # drop2: identity (eval mode)

    # ---- adaptive avg pool over T fused with fc (VPU mul + reductions) ----
    pooled = jnp.sum(h2.reshape(bblk, T, C2), axis=1) * inv_T   # (Bblk, 64)
    fc = jnp.sum(pooled * wfc_ref[...], axis=-1)                # (Bblk,)
    o_ref[...] = (fc + bfc_ref[0, 0]).reshape(1, 1, bblk)


def bnn_conv1d_forward(x, params, *, block_b=None, matmul_dtype=jnp.bfloat16):
    """x: (B, T, C_in) float32 -> (B, 1) float32.

    Matmul inputs are cast to `matmul_dtype` (bf16 default, MXU-native on
    v5e/v6e/v7x); accumulation, biases, ReLU, pooling and fc stay float32.
    """
    w1, b1, w2, b2, wfc, bfc = params   # w1:(3,C_in,32) w2:(3,32,64) wfc:(1,64)
    B, T, C_in = x.shape
    C1 = w1.shape[2]  # 32
    C2 = w2.shape[2]  # 64

    if block_b is None:
        # Target ~1024 matmul rows per grid step, but keep >= 2 grid steps when
        # B allows so v7x's two TensorCores both get work on the parallel axis.
        block_b = max(1, min(B, pl.cdiv(1024, T)))
        if B > 1 and pl.cdiv(B, block_b) < 2:
            block_b = pl.cdiv(B, 2)
    bblk = int(max(1, min(block_b, B)))
    n_blk = pl.cdiv(B, bblk)
    B_pad = n_blk * bblk

    # Pad batch to a block multiple and time by 1 on each side (conv padding=1).
    # No host-side im2col expansion of x.
    xp = jnp.pad(x, ((0, B_pad - B), (1, 1), (0, 0))).astype(matmul_dtype)
    w1c = w1.astype(matmul_dtype)
    w2c = w2.astype(matmul_dtype)

    const3 = lambda b: (0, 0, 0)
    const2 = lambda b: (0, 0)

    out = pl.pallas_call(
        bnn_conv1d_kernel,
        out_shape=jax.ShapeDtypeStruct((n_blk, 1, bblk), jnp.float32),
        grid=(n_blk,),
        in_specs=[
            pl.BlockSpec((bblk, T + 2, C_in), lambda b: (b, 0, 0)),  # x (padded)
            pl.BlockSpec((3, C_in, C1), const3),                     # w1 taps
            pl.BlockSpec((1, C1), const2),                           # b1
            pl.BlockSpec((3, C1, C2), const3),                       # w2 taps
            pl.BlockSpec((1, C2), const2),                           # b2
            pl.BlockSpec((1, C2), const2),                           # wfc row
            pl.BlockSpec(memory_space=pltpu.MemorySpace.SMEM),       # bfc scalar
        ],
        out_specs=pl.BlockSpec((1, 1, bblk), lambda b: (b, 0, 0)),
        compiler_params=pltpu.CompilerParams(
            dimension_semantics=("parallel",)),
    )(xp, w1c, b1, w2c, b2, wfc, bfc)
    return out.reshape(B_pad, 1)[:B]


def init_params(key, input_channels):
    """Deterministic synthetic parameters (PyTorch shapes, re-laid-out)."""
    ks = jax.random.split(key, 6)
    # PyTorch Conv1d weight is (out_ch, in_ch, k); we pass (k, in_ch, out_ch).
    w1_t = jax.random.normal(ks[0], (32, input_channels, 3), jnp.float32) * 0.1
    b1 = jax.random.normal(ks[1], (32,), jnp.float32) * 0.1
    w2_t = jax.random.normal(ks[2], (64, 32, 3), jnp.float32) * 0.1
    b2 = jax.random.normal(ks[3], (64,), jnp.float32) * 0.1
    # PyTorch Linear weight is (out, in) = (1, 64); we keep it lane-dense (1,64).
    wfc = jax.random.normal(ks[4], (1, 64), jnp.float32) * 0.1
    bfc = jax.random.normal(ks[5], (1,), jnp.float32) * 0.1

    w1 = jnp.transpose(w1_t, (2, 1, 0))   # (3, C_in, 32)
    w2 = jnp.transpose(w2_t, (2, 1, 0))   # (3, 32, 64)
    return (w1, b1.reshape(1, 32), w2, b2.reshape(1, 64),
            wfc, bfc.reshape(1, 1))


def reference_forward(x, params):
    """Pure-JAX reference of the PyTorch forward (eval mode)."""
    w1, b1, w2, b2, wfc, bfc = params
    B, T, _ = x.shape
    xp = jnp.pad(x, ((0, 0), (1, 1), (0, 0)))
    h1 = sum(jnp.einsum("btc,cd->btd", xp[:, k:k + T, :], w1[k])
             for k in range(3)) + b1[None]
    h1 = jnp.maximum(h1, 0.0)
    h1p = jnp.pad(h1, ((0, 0), (1, 1), (0, 0)))
    h2 = sum(jnp.einsum("btc,cd->btd", h1p[:, k:k + T, :], w2[k])
             for k in range(3)) + b2[None]
    h2 = jnp.maximum(h2, 0.0)
    pooled = jnp.mean(h2, axis=1)                # (B, 64)
    return pooled @ wfc.T + bfc                  # (B, 1)


if __name__ == "__main__":
    key = jax.random.PRNGKey(0)
    kx, kp = jax.random.split(key)

    # B chosen not a multiple of block_b to exercise the padded-batch tail.
    B, T, C_in = 6, 16, 4
    x = jax.random.normal(kx, (B, T, C_in), jnp.float32)
    params = init_params(kp, C_in)

    ref = reference_forward(x, params)

    # f32 matmul-input path with an explicit block_b (B_pad=8 -> padded tail).
    out_f32 = jax.block_until_ready(
        bnn_conv1d_forward(x, params, block_b=4, matmul_dtype=jnp.float32))
    assert out_f32.shape == (B, 1), out_f32.shape
    assert jnp.allclose(out_f32, ref, atol=1e-4, rtol=1e-4), (out_f32, ref)

    # Default path: bf16 matmul inputs, f32 accumulation, auto block_b
    # (grid of 2 so both v7x TensorCores get work).  Tolerance tightened vs the
    # previous revision's 1e-1 to catch layout / cast regressions.
    out_bf16 = jax.block_until_ready(bnn_conv1d_forward(x, params))
    assert out_bf16.shape == (B, 1), out_bf16.shape
    assert jnp.allclose(out_bf16, ref, atol=2e-2, rtol=2e-2), (out_bf16, ref)

    print("KERNEL_OK")
</pallas_src>

<mosaic_0001>
module attributes {stable_mosaic.version = 11 : i64} {
  func.func @bnn_conv1d_kernel(%arg0: i32, %arg1: memref<4x18x4xf32, #tpu.memory_space<vmem>>, %arg2: memref<3x4x32xf32, #tpu.memory_space<vmem>>, %arg3: memref<1x32xf32, #tpu.memory_space<vmem>>, %arg4: memref<3x32x64xf32, #tpu.memory_space<vmem>>, %arg5: memref<1x64xf32, #tpu.memory_space<vmem>>, %arg6: memref<1x64xf32, #tpu.memory_space<vmem>>, %arg7: memref<1x1xf32, #tpu.memory_space<smem>>, %arg8: memref<1x1x4xf32, #tpu.memory_space<vmem>>) attributes {dimension_semantics = [#tpu.dimension_semantics<parallel>], iteration_bounds = array<i64: 2>, scalar_prefetch = 0 : i64, scratch_operands = 0 : i64, tpu.core_type = #tpu.core_type<tc>, window_params = [{transform_indices = @transform_0, window_bounds = array<i64: 4, 18, 4>}, {pipeline_mode = #tpu.pipeline_mode<synchronous>, transform_indices = @transform_1, window_bounds = array<i64: 3, 4, 32>}, {pipeline_mode = #tpu.pipeline_mode<synchronous>, transform_indices = @transform_2, window_bounds = array<i64: 1, 32>}, {pipeline_mode = #tpu.pipeline_mode<synchronous>, transform_indices = @transform_3, window_bounds = array<i64: 3, 32, 64>}, {pipeline_mode = #tpu.pipeline_mode<synchronous>, transform_indices = @transform_4, window_bounds = array<i64: 1, 64>}, {pipeline_mode = #tpu.pipeline_mode<synchronous>, transform_indices = @transform_5, window_bounds = array<i64: 1, 64>}, {transform_indices = @transform_6, window_bounds = array<i64: 1, 1>}, {transform_indices = @transform_7, window_bounds = array<i64: 1, 1, 4>}]} {
    %c0 = arith.constant 0 : index
    %c0_0 = arith.constant 0 : index
    %c0_1 = arith.constant 0 : index
    %0 = vector.load %arg1[%c0, %c0_0, %c0_1] : memref<4x18x4xf32, #tpu.memory_space<vmem>>, vector<4x16x4xf32>
    %1 = vector.shape_cast %0 : vector<4x16x4xf32> to vector<64x4xf32>
    %c0_2 = arith.constant 0 : index
    %c0_3 = arith.constant 0 : index
    %c0_4 = arith.constant 0 : index
    %2 = vector.load %arg2[%c0_2, %c0_3, %c0_4] : memref<3x4x32xf32, #tpu.memory_space<vmem>>, vector<1x4x32xf32>
    %3 = vector.shape_cast %2 : vector<1x4x32xf32> to vector<4x32xf32>
    %cst = arith.constant dense<0.000000e+00> : vector<64x32xf32>
    %4 = tpu.matmul %1, %3, %cst {dimension_numbers = #tpu.dot_dimension_numbers<[1], [0], [0], [1], [0, 0, 1, 1], [], []>} : vector<64x4xf32>, vector<4x32xf32>, vector<64x32xf32> -> vector<64x32xf32>
    %c0_5 = arith.constant 0 : index
    %c1 = arith.constant 1 : index
    %c0_6 = arith.constant 0 : index
    %5 = vector.load %arg1[%c0_5, %c1, %c0_6] : memref<4x18x4xf32, #tpu.memory_space<vmem>>, vector<4x16x4xf32>
    %6 = vector.shape_cast %5 : vector<4x16x4xf32> to vector<64x4xf32>
    %c1_7 = arith.constant 1 : index
    %c0_8 = arith.constant 0 : index
    %c0_9 = arith.constant 0 : index
    %7 = vector.load %arg2[%c1_7, %c0_8, %c0_9] : memref<3x4x32xf32, #tpu.memory_space<vmem>>, vector<1x4x32xf32>
    %8 = vector.shape_cast %7 : vector<1x4x32xf32> to vector<4x32xf32>
    %cst_10 = arith.constant dense<0.000000e+00> : vector<64x32xf32>
    %9 = tpu.matmul %6, %8, %cst_10 {dimension_numbers = #tpu.dot_dimension_numbers<[1], [0], [0], [1], [0, 0, 1, 1], [], []>} : vector<64x4xf32>, vector<4x32xf32>, vector<64x32xf32> -> vector<64x32xf32>
    %10 = arith.addf %4, %9 : vector<64x32xf32>
    %c0_11 = arith.constant 0 : index
    %c2 = arith.constant 2 : index
    %c0_12 = arith.constant 0 : index
    %11 = vector.load %arg1[%c0_11, %c2, %c0_12] : memref<4x18x4xf32, #tpu.memory_space<vmem>>, vector<4x16x4xf32>
    %12 = vector.shape_cast %11 : vector<4x16x4xf32> to vector<64x4xf32>
    %c2_13 = arith.constant 2 : index
    %c0_14 = arith.constant 0 : index
    %c0_15 = arith.constant 0 : index
    %13 = vector.load %arg2[%c2_13, %c0_14, %c0_15] : memref<3x4x32xf32, #tpu.memory_space<vmem>>, vector<1x4x32xf32>
    %14 = vector.shape_cast %13 : vector<1x4x32xf32> to vector<4x32xf32>
    %cst_16 = arith.constant dense<0.000000e+00> : vector<64x32xf32>
    %15 = tpu.matmul %12, %14, %cst_16 {dimension_numbers = #tpu.dot_dimension_numbers<[1], [0], [0], [1], [0, 0, 1, 1], [], []>} : vector<64x4xf32>, vector<4x32xf32>, vector<64x32xf32> -> vector<64x32xf32>
    %16 = arith.addf %10, %15 : vector<64x32xf32>
    %c0_17 = arith.constant 0 : index
    %c0_18 = arith.constant 0 : index
    %17 = vector.load %arg3[%c0_17, %c0_18] : memref<1x32xf32, #tpu.memory_space<vmem>>, vector<1x32xf32>
    %18 = vector.broadcast %17 : vector<1x32xf32> to vector<64x32xf32>
    %19 = arith.addf %16, %18 : vector<64x32xf32>
    %cst_19 = arith.constant 0.000000e+00 : f32
    %20 = vector.broadcast %cst_19 : f32 to vector<64x32xf32>
    %21 = arith.maximumf %19, %20 : vector<64x32xf32>
    %22 = tpu.iota {dimensions = array<i32: 0>} : vector<64x32xi32>
    %c16_i32 = arith.constant 16 : i32
    %c0_i32 = arith.constant 0 : i32
    %23 = arith.cmpi eq, %c16_i32, %c0_i32 : i32
    %c1_i32 = arith.constant 1 : i32
    %24 = arith.select %23, %c1_i32, %c16_i32 : i32
    %25 = vector.broadcast %24 : i32 to vector<64x32xi32>
    %26 = arith.remsi %22, %25 : vector<64x32xi32>
    %c0_i32_20 = arith.constant 0 : i32
    %27 = vector.broadcast %c0_i32_20 : i32 to vector<64x32xi32>
    %28 = arith.cmpi ne, %26, %27 : vector<64x32xi32>
    %c0_i32_21 = arith.constant 0 : i32
    %29 = vector.broadcast %c0_i32_21 : i32 to vector<64x32xi32>
    %30 = arith.cmpi slt, %26, %29 : vector<64x32xi32>
    %c0_i32_22 = arith.constant 0 : i32
    %31 = arith.cmpi slt, %24, %c0_i32_22 : i32
    %32 = vector.broadcast %31 : i1 to vector<64x32xi1>
    %33 = vector.broadcast %32 : vector<64x32xi1> to vector<64x32xi1>
    %34 = arith.xori %30, %33 : vector<64x32xi1>
    %35 = arith.andi %34, %28 : vector<64x32xi1>
    %36 = vector.broadcast %24 : i32 to vector<64x32xi32>
    %37 = arith.addi %26, %36 : vector<64x32xi32>
    %38 = arith.select %35, %37, %26 : vector<64x32xi1>, vector<64x32xi32>
    %cst_23 = arith.constant 0.000000e+00 : f32
    %39 = vector.broadcast %cst_23 : f32 to vector<64x32xf32>
    %c0_i32_24 = arith.constant 0 : i32
    %40 = vector.broadcast %c0_i32_24 : i32 to vector<64x32xi32>
    %41 = arith.cmpi eq, %38, %40 : vector<64x32xi32>
    %c1_i32_25 = arith.constant 1 : i32
    %42 = tpu.dynamic_rotate %21 by %c1_i32_25 dim 0 : vector<64x32xf32>, i32 -> vector<64x32xf32>
    %43 = arith.select %41, %39, %42 : vector<64x32xi1>, vector<64x32xf32>
    %c15_i32 = arith.constant 15 : i32
    %44 = vector.broadcast %c15_i32 : i32 to vector<64x32xi32>
    %45 = arith.cmpi eq, %38, %44 : vector<64x32xi32>
    %c63_i32 = arith.constant 63 : i32
    %46 = tpu.dynamic_rotate %21 by %c63_i32 dim 0 : vector<64x32xf32>, i32 -> vector<64x32xf32>
    %47 = arith.select %45, %39, %46 : vector<64x32xi1>, vector<64x32xf32>
    %c0_26 = arith.constant 0 : index
    %c0_27 = arith.constant 0 : index
    %c0_28 = arith.constant 0 : index
    %48 = vector.load %arg4[%c0_26, %c0_27, %c0_28] : memref<3x32x64xf32, #tpu.memory_space<vmem>>, vector<1x32x64xf32>
    %49 = vector.shape_cast %48 : vector<1x32x64xf32> to vector<32x64xf32>
    %cst_29 = arith.constant dense<0.000000e+00> : vector<64x64xf32>
    %50 = tpu.matmul %43, %49, %cst_29 {dimension_numbers = #tpu.dot_dimension_numbers<[1], [0], [0], [1], [0, 0, 1, 1], [], []>} : vector<64x32xf32>, vector<32x64xf32>, vector<64x64xf32> -> vector<64x64xf32>
    %c1_30 = arith.constant 1 : index
    %c0_31 = arith.constant 0 : index
    %c0_32 = arith.constant 0 : index
    %51 = vector.load %arg4[%c1_30, %c0_31, %c0_32] : memref<3x32x64xf32, #tpu.memory_space<vmem>>, vector<1x32x64xf32>
    %52 = vector.shape_cast %51 : vector<1x32x64xf32> to vector<32x64xf32>
    %cst_33 = arith.constant dense<0.000000e+00> : vector<64x64xf32>
    %53 = tpu.matmul %21, %52, %cst_33 {dimension_numbers = #tpu.dot_dimension_numbers<[1], [0], [0], [1], [0, 0, 1, 1], [], []>} : vector<64x32xf32>, vector<32x64xf32>, vector<64x64xf32> -> vector<64x64xf32>
    %54 = arith.addf %50, %53 : vector<64x64xf32>
    %c2_34 = arith.constant 2 : index
    %c0_35 = arith.constant 0 : index
    %c0_36 = arith.constant 0 : index
    %55 = vector.load %arg4[%c2_34, %c0_35, %c0_36] : memref<3x32x64xf32, #tpu.memory_space<vmem>>, vector<1x32x64xf32>
    %56 = vector.shape_cast %55 : vector<1x32x64xf32> to vector<32x64xf32>
    %cst_37 = arith.constant dense<0.000000e+00> : vector<64x64xf32>
    %57 = tpu.matmul %47, %56, %cst_37 {dimension_numbers = #tpu.dot_dimension_numbers<[1], [0], [0], [1], [0, 0, 1, 1], [], []>} : vector<64x32xf32>, vector<32x64xf32>, vector<64x64xf32> -> vector<64x64xf32>
    %58 = arith.addf %54, %57 : vector<64x64xf32>
    %c0_38 = arith.constant 0 : index
    %c0_39 = arith.constant 0 : index
    %59 = vector.load %arg5[%c0_38, %c0_39] : memref<1x64xf32, #tpu.memory_space<vmem>>, vector<1x64xf32>
    %60 = vector.broadcast %59 : vector<1x64xf32> to vector<64x64xf32>
    %61 = arith.addf %58, %60 : vector<64x64xf32>
    %cst_40 = arith.constant 0.000000e+00 : f32
    %62 = vector.broadcast %cst_40 : f32 to vector<64x64xf32>
    %63 = arith.maximumf %61, %62 : vector<64x64xf32>
    %64 = vector.shape_cast %63 : vector<64x64xf32> to vector<4x16x64xf32>
    %cst_41 = arith.constant dense<0.000000e+00> : vector<4x64xf32>
    %65 = vector.multi_reduction <add>, %64, %cst_41 [1] : vector<4x16x64xf32> to vector<4x64xf32>
    %cst_42 = arith.constant 6.250000e-02 : f32
    %66 = vector.broadcast %cst_42 : f32 to vector<4x64xf32>
    %67 = arith.mulf %65, %66 : vector<4x64xf32>
    %c0_43 = arith.constant 0 : index
    %c0_44 = arith.constant 0 : index
    %68 = vector.load %arg6[%c0_43, %c0_44] : memref<1x64xf32, #tpu.memory_space<vmem>>, vector<1x64xf32>
    %69 = vector.broadcast %68 : vector<1x64xf32> to vector<4x64xf32>
    %70 = arith.mulf %67, %69 : vector<4x64xf32>
    %cst_45 = arith.constant dense<0.000000e+00> : vector<4xf32>
    %71 = vector.multi_reduction <add>, %70, %cst_45 [1] : vector<4x64xf32> to vector<4xf32>
    %c0_46 = arith.constant 0 : index
    %c0_47 = arith.constant 0 : index
    %72 = memref.load %arg7[%c0_46, %c0_47] : memref<1x1xf32, #tpu.memory_space<smem>>
    %73 = vector.broadcast %72 : f32 to vector<4xf32>
    %74 = arith.addf %71, %73 : vector<4xf32>
    %75 = vector.shape_cast %74 : vector<4xf32> to vector<1x1x4xf32>
    %c0_48 = arith.constant 0 : index
    %c0_49 = arith.constant 0 : index
    %c0_50 = arith.constant 0 : index
    %76 = vector.load %arg8[%c0_48, %c0_49, %c0_50] : memref<1x1x4xf32, #tpu.memory_space<vmem>>, vector<1x1x4xf32>
    tpu.vector_store %arg8[%c0_48, %c0_49, %c0_50], %75 {strides = array<i32>} : memref<1x1x4xf32, #tpu.memory_space<vmem>>, vector<1x1x4xf32>,
    return
  }
  func.func @transform_0(%arg0: i32) -> (i32, i32, i32) {
    %c0_i32 = arith.constant 0 : i32
    %c0_i32_0 = arith.constant 0 : i32
    %c0_i32_1 = arith.constant 0 : i32
    return %arg0, %c0_i32, %c0_i32_0 : i32, i32, i32
  }
  func.func @transform_1(%arg0: i32) -> (i32, i32, i32) {
    %c0_i32 = arith.constant 0 : i32
    %c0_i32_0 = arith.constant 0 : i32
    %c0_i32_1 = arith.constant 0 : i32
    %c0_i32_2 = arith.constant 0 : i32
    return %c0_i32, %c0_i32_0, %c0_i32_1 : i32, i32, i32
  }
  func.func @transform_2(%arg0: i32) -> (i32, i32) {
    %c0_i32 = arith.constant 0 : i32
    %c0_i32_0 = arith.constant 0 : i32
    %c0_i32_1 = arith.constant 0 : i32
    return %c0_i32, %c0_i32_0 : i32, i32
  }
  func.func @transform_3(%arg0: i32) -> (i32, i32, i32) {
    %c0_i32 = arith.constant 0 : i32
    %c0_i32_0 = arith.constant 0 : i32
    %c0_i32_1 = arith.constant 0 : i32
    %c0_i32_2 = arith.constant 0 : i32
    return %c0_i32, %c0_i32_0, %c0_i32_1 : i32, i32, i32
  }
  func.func @transform_4(%arg0: i32) -> (i32, i32) {
    %c0_i32 = arith.constant 0 : i32
    %c0_i32_0 = arith.constant 0 : i32
    %c0_i32_1 = arith.constant 0 : i32
    return %c0_i32, %c0_i32_0 : i32, i32
  }
  func.func @transform_5(%arg0: i32) -> (i32, i32) {
    %c0_i32 = arith.constant 0 : i32
    %c0_i32_0 = arith.constant 0 : i32
    %c0_i32_1 = arith.constant 0 : i32
    return %c0_i32, %c0_i32_0 : i32, i32
  }
  func.func @transform_6(%arg0: i32) -> (i32, i32) {
    %c0_i32 = arith.constant 0 : i32
    %c0_i32_0 = arith.constant 0 : i32
    %c0_i32_1 = arith.constant 0 : i32
    return %c0_i32, %c0_i32_0 : i32, i32
  }
  func.func @transform_7(%arg0: i32) -> (i32, i32, i32) {
    %c0_i32 = arith.constant 0 : i32
    %c0_i32_0 = arith.constant 0 : i32
    %c0_i32_1 = arith.constant 0 : i32
    return %arg0, %c0_i32, %c0_i32_0 : i32, i32, i32
  }
}

</mosaic_0001>

<llo_original>
// kernel: tpu_custom_call.1
$region0: #{tpu_custom_call.1}
  #allocation0 [shape = 'u32[]', space=smem, size = 0x4, offset = 0x4, fixed_abs, tag = 'smem constant byte address 0x4 - core index']
  #allocation1 [shape = 'u32[72,128]{1,0:T(1,128)}', space=vmem, size = 0x9000, scoped, tag = 'internal scratch']
  #allocation2 [shape = 'f32[1,1]{1,0:T(1,128)S(6)}', space=smem, size = 0x200, scoped, tag = 'scoped memory for tpu_custom_call.1']
  %s0 = inlined_call_operand.vmem [shape: f32[8,18,4], index: 0, kind: input, shape index: {}]
  %s1 = inlined_call_operand.vmem [shape: f32[3,4,32], index: 1, kind: input, shape index: {}]
  %s2 = inlined_call_operand.vmem [shape: f32[1,32], index: 2, kind: input, shape index: {}]
  %s3 = inlined_call_operand.vmem [shape: f32[3,32,64], index: 3, kind: input, shape index: {}]
  %s4 = inlined_call_operand.vmem [shape: f32[1,64], index: 4, kind: input, shape index: {}]
  %s5 = inlined_call_operand.vmem [shape: f32[1,64], index: 5, kind: input, shape index: {}]
  %s6 = inlined_call_operand.<no memory space> [shape: f32[1,1], index: 6, kind: input, shape index: {}]
  %s7 = inlined_call_operand.hbm [shape: f32[2,1,4], index: 7, kind: output, shape index: {}]
  %s8 = sld [smem:[#allocation0]]
  $region61: #{tpu_custom_call.1} parent=0
    _
  %s10 = ssub.s32 1, %s8
  %s11 = scalar_select 0, %s10, %s8
  %12 = sst [smem:[#allocation2]] %s6
  $region1: #{tpu_custom_call.1} parent=0
    #allocation3 [shape = 'u8[1024]{0}', space=vmem, size = 0x400, scoped, tag = 'output window, operand 0']
    #allocation4 [shape = 's32[2]{0}', space=sflag, size = 0x8, scoped, tag = 'scoped memory for tpu_custom_call.1']
    %13 = vsyncpa [#allocation4], 0
    %s14 = scalar_lea.sflag [#allocation4], 1
    %15 = vsyncpa %s14, 0
    loop: start=0, step=1, limit=4
    $region2: #{tpu_custom_call.1} parent=1 // loop_pre_header
      _
    $region3: #{tpu_custom_call.1} parent=1 // loop_header
      %s17 = sphi 0, %s21
      %p18 = scmp.ge.s32.totalorder %s17, 4
      %s27 = sphi 0, %s29
      %s30 = sphi 0, %s27
      %s31 = sphi 0, %s30
      %s47 = sphi 0, %s31
      %s51 = sphi 0, %s51
      %s53 = sphi 0, %s51
      %s54 = sphi 0, %s53
      %s68 = sphi 0, %s54
      %s72 = sphi 0, %s72
      %s74 = sphi 0, %s72
      %s75 = sphi 0, %s74
      %s89 = sphi 0, %s75
      %s93 = sphi 0, %s93
      %s95 = sphi 0, %s93
      %s96 = sphi 0, %s95
      %s110 = sphi 0, %s96
      %s114 = sphi 0, %s114
      %s116 = sphi 0, %s114
      %s117 = sphi 0, %s116
      %s131 = sphi 0, %s117
      %s135 = sphi 0, %s135
      %s137 = sphi 0, %s135
      %s138 = sphi 0, %s137
      %s152 = sphi 0, %s138
      %s156 = sphi 0, %s156
      %s158 = sphi 0, %s156
      %s159 = sphi 0, %s158
      %s173 = sphi 0, %s159
      %s179 = sphi 0, %s181
      %s182 = sphi 0, %s179
      %s183 = sphi 0, %s182
      %s199 = sphi 0, %s183
    $region4: #{tpu_custom_call.1} parent=1 // loop_header_branch
      %20 = sbr.rel (%p18) target = $region8
    $region5: #{tpu_custom_call.1} parent=1 // loop_body
      %s22 = ssub.s32 %s17, 1
      %s23 = ssub.s32 %s17, 2
      %s24 = sadd.s32 %s17, 1
      %s25 = ssub.s32 %s17, %s24
      %p26 = scmp.eq.s32.totalorder %s25, 0
      %s28 = sadd.s32 %s27, 1
      %s29 = scalar_select %p26, %s27, %s28
      %p32 = pneg %p26
      %p33 = scmp.eq.s32.totalorder %s17, 1
      %p34 = por %p32, %p33
      %p35 = scmp.ne.s32.totalorder %s27, %s30
      %p36 = scmp.eq.s32.totalorder %s17, 0
      %p37 = por %p35, %p36
      %p38 = scmp.ne.s32.totalorder %s27, %s30
      %p39 = scmp.eq.s32.totalorder %s22, 1
      %p40 = por %p38, %p39
      %p41 = scmp.ne.s32.totalorder %s30, %s31
      %p42 = scmp.eq.s32.totalorder %s22, 0
      %p43 = por %p41, %p42
      %p44 = scmp.ne.s32.totalorder %s30, %s31
      %p45 = scmp.eq.s32.totalorder %s23, 1
      %p46 = por %p44, %p45
      %p48 = scmp.ne.s32.totalorder %s31, %s47
      %p49 = scmp.eq.s32.totalorder %s23, 0
      %p50 = por %p48, %p49
      %s52 = sadd.s32 %s51, 1
      %p55 = scmp.eq.s32.totalorder %s17, 1
      %p56 = scmp.ne.s32.totalorder %s51, %s53
      %p57 = scmp.eq.s32.totalorder %s17, 0
      %p58 = por %p56, %p57
      %p59 = scmp.ne.s32.totalorder %s51, %s53
      %p60 = scmp.eq.s32.totalorder %s22, 1
      %p61 = por %p59, %p60
      %p62 = scmp.ne.s32.totalorder %s53, %s54
      %p63 = scmp.eq.s32.totalorder %s22, 0
      %p64 = por %p62, %p63
      %p65 = scmp.ne.s32.totalorder %s53, %s54
      %p66 = scmp.eq.s32.totalorder %s23, 1
      %p67 = por %p65, %p66
      %p69 = scmp.ne.s32.totalorder %s54, %s68
      %p70 = scmp.eq.s32.totalorder %s23, 0
      %p71 = por %p69, %p70
      %s73 = sadd.s32 %s72, 1
      %p76 = scmp.eq.s32.totalorder %s17, 1
      %p77 = scmp.ne.s32.totalorder %s72, %s74
      %p78 = scmp.eq.s32.totalorder %s17, 0
      %p79 = por %p77, %p78
      %p80 = scmp.ne.s32.totalorder %s72, %s74
      %p81 = scmp.eq.s32.totalorder %s22, 1
      %p82 = por %p80, %p81
      %p83 = scmp.ne.s32.totalorder %s74, %s75
      %p84 = scmp.eq.s32.totalorder %s22, 0
      %p85 = por %p83, %p84
      %p86 = scmp.ne.s32.totalorder %s74, %s75
      %p87 = scmp.eq.s32.totalorder %s23, 1
      %p88 = por %p86, %p87
      %p90 = scmp.ne.s32.totalorder %s75, %s89
      %p91 = scmp.eq.s32.totalorder %s23, 0
      %p92 = por %p90, %p91
      %s94 = sadd.s32 %s93, 1
      %p97 = scmp.eq.s32.totalorder %s17, 1
      %p98 = scmp.ne.s32.totalorder %s93, %s95
      %p99 = scmp.eq.s32.totalorder %s17, 0
      %p100 = por %p98, %p99
      %p101 = scmp.ne.s32.totalorder %s93, %s95
      %p102 = scmp.eq.s32.totalorder %s22, 1
      %p103 = por %p101, %p102
      %p104 = scmp.ne.s32.totalorder %s95, %s96
      %p105 = scmp.eq.s32.totalorder %s22, 0
      %p106 = por %p104, %p105
      %p107 = scmp.ne.s32.totalorder %s95, %s96
      %p108 = scmp.eq.s32.totalorder %s23, 1
      %p109 = por %p107, %p108
      %p111 = scmp.ne.s32.totalorder %s96, %s110
      %p112 = scmp.eq.s32.totalorder %s23, 0
      %p113 = por %p111, %p112
      %s115 = sadd.s32 %s114, 1
      %p118 = scmp.eq.s32.totalorder %s17, 1
      %p119 = scmp.ne.s32.totalorder %s114, %s116
      %p120 = scmp.eq.s32.totalorder %s17, 0
      %p121 = por %p119, %p120
      %p122 = scmp.ne.s32.totalorder %s114, %s116
      %p123 = scmp.eq.s32.totalorder %s22, 1
      %p124 = por %p122, %p123
      %p125 = scmp.ne.s32.totalorder %s116, %s117
      %p126 = scmp.eq.s32.totalorder %s22, 0
      %p127 = por %p125, %p126
      %p128 = scmp.ne.s32.totalorder %s116, %s117
      %p129 = scmp.eq.s32.totalorder %s23, 1
      %p130 = por %p128, %p129
      %p132 = scmp.ne.s32.totalorder %s117, %s131
      %p133 = scmp.eq.s32.totalorder %s23, 0
      %p134 = por %p132, %p133
      %s136 = sadd.s32 %s135, 1
      %p139 = scmp.eq.s32.totalorder %s17, 1
      %p140 = scmp.ne.s32.totalorder %s135, %s137
      %p141 = scmp.eq.s32.totalorder %s17, 0
      %p142 = por %p140, %p141
      %p143 = scmp.ne.s32.totalorder %s135, %s137
      %p144 = scmp.eq.s32.totalorder %s22, 1
      %p145 = por %p143, %p144
      %p146 = scmp.ne.s32.totalorder %s137, %s138
      %p147 = scmp.eq.s32.totalorder %s22, 0
      %p148 = por %p146, %p147
      %p149 = scmp.ne.s32.totalorder %s137, %s138
      %p150 = scmp.eq.s32.totalorder %s23, 1
      %p151 = por %p149, %p150
      %p153 = scmp.ne.s32.totalorder %s138, %s152
      %p154 = scmp.eq.s32.totalorder %s23, 0
      %p155 = por %p153, %p154
      %s157 = sadd.s32 %s156, 1
      %p160 = scmp.eq.s32.totalorder %s17, 1
      %p161 = scmp.ne.s32.totalorder %s156, %s158
      %p162 = scmp.eq.s32.totalorder %s17, 0
      %p163 = por %p161, %p162
      %p164 = scmp.ne.s32.totalorder %s156, %s158
      %p165 = scmp.eq.s32.totalorder %s22, 1
      %p166 = por %p164, %p165
      %p167 = scmp.ne.s32.totalorder %s158, %s159
      %p168 = scmp.eq.s32.totalorder %s22, 0
      %p169 = por %p167, %p168
      %p170 = scmp.ne.s32.totalorder %s158, %s159
      %p171 = scmp.eq.s32.totalorder %s23, 1
      %p172 = por %p170, %p171
      %p174 = scmp.ne.s32.totalorder %s159, %s173
      %p175 = scmp.eq.s32.totalorder %s23, 0
      %p176 = por %p174, %p175
      %s177 = ssub.s32 %s17, %s24
      %p178 = scmp.eq.s32.totalorder %s177, 0
      %s180 = sadd.s32 %s179, 1
      %s181 = scalar_select %p178, %s179, %s180
      %p184 = pneg %p178
      %p185 = scmp.eq.s32.totalorder %s17, 1
      %p186 = por %p184, %p185
      %p187 = scmp.ne.s32.totalorder %s179, %s182
      %p188 = scmp.eq.s32.totalorder %s17, 0
      %p189 = por %p187, %p188
      %p190 = scmp.ne.s32.totalorder %s179, %s182
      %p191 = scmp.eq.s32.totalorder %s22, 1
      %p192 = por %p190, %p191
      %p193 = scmp.ne.s32.totalorder %s182, %s183
      %p194 = scmp.eq.s32.totalorder %s22, 0
      %p195 = por %p193, %p194
      %p196 = scmp.ne.s32.totalorder %s182, %s183
      %p197 = scmp.eq.s32.totalorder %s23, 1
      %p198 = por %p196, %p197
      %p200 = scmp.ne.s32.totalorder %s183, %s199
      %p201 = scmp.eq.s32.totalorder %s23, 0
      %p202 = por %p200, %p201
      %p203 = scmp.le.s32.totalorder 1, %s17
      %p204 = scmp.lt.s32.totalorder %s17, 3
      %p205 = pnand %p203, %p204
      %p206 = pneg %p205
      // Predicated region
      $region9: #{tpu_custom_call.1} parent=5 // pred_check
        _
      $region10: #{tpu_custom_call.1} parent=5 // pred_check_branch
        %208 = sbr.rel (%p205) target = $region12
      $region11: #{tpu_custom_call.1} parent=5 // pred_region
        %s209 = ssub.s32 %s17, 1
        // Predicated region
        $region13: #{tpu_custom_call.1} parent=11 // pred_check
          %p210 = pneg %p64
        $region14: #{tpu_custom_call.1} parent=11 // pred_check_branch
          %212 = sbr.rel (%p210) target = $region16
        $region15: #{tpu_custom_call.1} parent=11 // pred_region
          _
        $region16: #{tpu_custom_call.1} parent=11 // pred_fallthru
          _
        // Predicated region
        $region17: #{tpu_custom_call.1} parent=11 // pred_check
          %p213 = pneg %p85
        $region18: #{tpu_custom_call.1} parent=11 // pred_check_branch
          %215 = sbr.rel (%p213) target = $region20
        $region19: #{tpu_custom_call.1} parent=11 // pred_region
          _
        $region20: #{tpu_custom_call.1} parent=11 // pred_fallthru
          _
        // Predicated region
        $region21: #{tpu_custom_call.1} parent=11 // pred_check
          %p216 = pneg %p106
        $region22: #{tpu_custom_call.1} parent=11 // pred_check_branch
          %218 = sbr.rel (%p216) target = $region24
        $region23: #{tpu_custom_call.1} parent=11 // pred_region
          _
        $region24: #{tpu_custom_call.1} parent=11 // pred_fallthru
          _
        // Predicated region
        $region25: #{tpu_custom_call.1} parent=11 // pred_check
          %p219 = pneg %p127
        $region26: #{tpu_custom_call.1} parent=11 // pred_check_branch
          %221 = sbr.rel (%p219) target = $region28
        $region27: #{tpu_custom_call.1} parent=11 // pred_region
          _
        $region28: #{tpu_custom_call.1} parent=11 // pred_fallthru
          _
        // Predicated region
        $region29: #{tpu_custom_call.1} parent=11 // pred_check
          %p222 = pneg %p148
        $region30: #{tpu_custom_call.1} parent=11 // pred_check_branch
          %224 = sbr.rel (%p222) target = $region32
        $region31: #{tpu_custom_call.1} parent=11 // pred_region
          _
        $region32: #{tpu_custom_call.1} parent=11 // pred_fallthru
          _
        // Predicated region
        $region33: #{tpu_custom_call.1} parent=11 // pred_check
          %p225 = pneg %p169
        $region34: #{tpu_custom_call.1} parent=11 // pred_check_branch
          %227 = sbr.rel (%p225) target = $region36
        $region35: #{tpu_custom_call.1} parent=11 // pred_region
          _
        $region36: #{tpu_custom_call.1} parent=11 // pred_fallthru
          _
      $region12: #{tpu_custom_call.1} parent=5 // pred_fallthru
        _
      %p228 = scmp.lt.s32.totalorder %s17, 2
      // Predicated region
      $region37: #{tpu_custom_call.1} parent=5 // pred_check
        %p229 = pneg %p228
      $region38: #{tpu_custom_call.1} parent=5 // pred_check_branch
        %231 = sbr.rel (%p229) target = $region40
      $region39: #{tpu_custom_call.1} parent=5 // pred_region
        // Predicated region
        $region41: #{tpu_custom_call.1} parent=39 // pred_check
          %p232 = pneg %p37
        $region42: #{tpu_custom_call.1} parent=39 // pred_check_branch
          %234 = sbr.rel (%p232) target = $region44
        $region43: #{tpu_custom_call.1} parent=39 // pred_region
          %s235 = smul.u32 4, %s17
          %p236 = scmp.lt.s32.totalorder %s235, 7
          %s237 = scalar_select %p236, %s235, 7
          %s238 = smul.addr %s237, 3
          %s239 = smul.addr %s238, 8
          %s240 = scalar_lea.vmem %s0, %s239
          %s241 = smul.u32 4, %s17
        $region44: #{tpu_custom_call.1} parent=39 // pred_fallthru
          _
      $region40: #{tpu_custom_call.1} parent=5 // pred_fallthru
        _
      %p242 = scmp.le.s32.totalorder 1, %s17
      %p243 = scmp.lt.s32.totalorder %s17, 3
      %p244 = pnand %p242, %p243
      %p245 = pneg %p244
      // Predicated region
      $region45: #{tpu_custom_call.1} parent=5 // pred_check
        _
      $region46: #{tpu_custom_call.1} parent=5 // pred_check_branch
        %247 = sbr.rel (%p244) target = $region48
      $region47: #{tpu_custom_call.1} parent=5 // pred_region
        %s248 = ssub.s32 %s17, 1
        %s249 = smul.u32 4, %s22
        %p250 = scmp.lt.s32.totalorder %s249, 7
        %s251 = scalar_select %p250, %s249, 7
        %s252 = smul.addr %s251, 3
        %s253 = smul.addr %s252, 8
        %s254 = scalar_lea.vmem %s0, %s253
        %p255 = pneg %p43
        %p256 = pneg %p40
        %p257 = pneg %p64
        %p258 = pneg %p61
        %p259 = pneg %p85
        %p260 = pneg %p82
        %p261 = pneg %p106
        %p262 = pneg %p103
        %p263 = pneg %p127
        %p264 = pneg %p124
        %p265 = pneg %p148
        %p266 = pneg %p145
        %p267 = pneg %p169
        %p268 = pneg %p166
        %p269 = pneg %p195
        %p270 = pneg %p192
        %s271 = sand.u32 %s182, 1
        %s272 = scalar_lea.sflag [#allocation4], %s271
        %s273 = sand.u32 %s182, 1
        %s274 = scalar_lea.vmem [#allocation3], %s273
        %s275 = smul.u32 4, %s22
        %p276 = scmp.lt.s32.totalorder %s275, 7
        %s277 = scalar_select %p276, %s275, 7
        %s278 = smul.addr %s277, 3
        %s279 = smul.addr %s278, 8
        %s280 = scalar_lea.vmem %s0, %s279
        %s281 = smul.u32 4, %s22
        %v282 = vld [vmem:[%s280] sm:$0xff]
        %v283 = vld [vmem:[%s280 + $0x8] sm:$0xff]
        %v284 = vld [vmem:[%s280 + $0x18] sm:$0xff]
        %v285 = vld [vmem:[%s280 + $0x20] sm:$0xff]
        %v286 = vld [vmem:[%s280 + $0x30] sm:$0xff]
        %v287 = vld [vmem:[%s280 + $0x38] sm:$0xff]
        %v288 = vld [vmem:[%s280 + $0x48] sm:$0xff]
        %v289 = vld [vmem:[%s280 + $0x50] sm:$0xff]
        %v290 = vld [vmem:[%s1] sm:$0xf]
        %v291 = vld [vmem:[%s280 + $0x1] sm:$0xff]
        %v292 = vld [vmem:[%s280 + $0x9] sm:$0xff]
        %v293 = vld [vmem:[%s280 + $0x19] sm:$0xff]
        %v294 = vld [vmem:[%s280 + $0x21] sm:$0xff]
        %v295 = vld [vmem:[%s280 + $0x31] sm:$0xff]
        %v296 = vld [vmem:[%s280 + $0x39] sm:$0xff]
        %v297 = vld [vmem:[%s280 + $0x49] sm:$0xff]
        %v298 = vld [vmem:[%s280 + $0x51] sm:$0xff]
        %s299 = scalar_lea.vmem %s1, 4
        %v300 = vld [vmem:[%s299] sm:$0xf]
        %vm301 = vcmask 31744
        %v303 = vsel %vm301, %v291, 0
        %v306 = vsel %vm301, %v292, 0
        %v309 = vsel %vm301, %v293, 0
        %v312 = vsel %vm301, %v294, 0
        %v315 = vsel %vm301, %v295, 0
        %v318 = vsel %vm301, %v296, 0
        %v321 = vsel %vm301, %v297, 0
        %v324 = vsel %vm301, %v298, 0
        %vm326 = vcmask 1043456
        %v328 = vsel %vm326, %v300, 0
        %330 = vmatpush.msra.mxu0 0.0
        %331 = vmatpush.msra.mxu0 0.0
        %332 = vmatpush.msra.mxu0 0.0
        %333 = vmatpush.msra.mxu0 0.0
        %334 = vmatpush.msra.mxu0 0.0
        %335 = vmatpush.msra.mxu0 0.0
        %336 = vmatpush.msra.mxu0 0.0
        %337 = vmatpush.msra.mxu0 0.0
        %338 = vmatpush.msra.mxu0 0.0
        %339 = vmatpush.msra.mxu0 0.0
        %340 = vmatpush.msra.mxu0 0.0
        %341 = vmatpush.msra.mxu0 0.0
        %342 = vmatpush.msra.mxu0 0.0
        %343 = vmatpush.msra.mxu0 0.0
        %344 = vmatpush.msra.mxu0 0.0
        %345 = vmatpush.msra.mxu0 %v328
        %346 = vmatmul.f32.gmra.mxu0 %v303
        %v347 = vpop.f32.mrf.mxu0
        %v348 = vadd.f32 0.0, %v347
        %349 = vmatmul.f32.gmra.mxu0 %v306
        %v350 = vpop.f32.mrf.mxu0
        %v351 = vadd.f32 0.0, %v350
        %352 = vmatmul.f32.gmra.mxu0 %v309
        %v353 = vpop.f32.mrf.mxu0
        %v354 = vadd.f32 0.0, %v353
        %355 = vmatmul.f32.gmra.mxu0 %v312
        %v356 = vpop.f32.mrf.mxu0
        %v357 = vadd.f32 0.0, %v356
        %358 = vmatmul.f32.gmra.mxu0 %v315
        %v359 = vpop.f32.mrf.mxu0
        %v360 = vadd.f32 0.0, %v359
        %361 = vmatmul.f32.gmra.mxu0 %v318
        %v362 = vpop.f32.mrf.mxu0
        %v363 = vadd.f32 0.0, %v362
        %364 = vmatmul.f32.gmra.mxu0 %v321
        %v365 = vpop.f32.mrf.mxu0
        %v366 = vadd.f32 0.0, %v365
        %367 = vmatmul.f32.gmra.mxu0 %v324
        %v368 = vpop.f32.mrf.mxu0
        %v369 = vadd.f32 0.0, %v368
        %370 = vdwg.mxu0
        %v372 = vsel %vm301, %v282, 0
        %v375 = vsel %vm301, %v283, 0
        %v378 = vsel %vm301, %v284, 0
        %v381 = vsel %vm301, %v285, 0
        %v384 = vsel %vm301, %v286, 0
        %v387 = vsel %vm301, %v287, 0
        %v390 = vsel %vm301, %v288, 0
        %v393 = vsel %vm301, %v289, 0
        %v396 = vsel %vm326, %v290, 0
        %398 = vmatpush.msra.mxu0 0.0
        %399 = vmatpush.msra.mxu0 0.0
        %400 = vmatpush.msra.mxu0 0.0
        %401 = vmatpush.msra.mxu0 0.0
        %402 = vmatpush.msra.mxu0 0.0
        %403 = vmatpush.msra.mxu0 0.0
        %404 = vmatpush.msra.mxu0 0.0
        %405 = vmatpush.msra.mxu0 0.0
        %406 = vmatpush.msra.mxu0 0.0
        %407 = vmatpush.msra.mxu0 0.0
        %408 = vmatpush.msra.mxu0 0.0
        %409 = vmatpush.msra.mxu0 0.0
        %410 = vmatpush.msra.mxu0 0.0
        %411 = vmatpush.msra.mxu0 0.0
        %412 = vmatpush.msra.mxu0 0.0
        %413 = vmatpush.msra.mxu0 %v396
        %414 = vmatmul.f32.gmra.mxu0 %v372
        %v415 = vpop.f32.mrf.mxu0
        %v416 = vadd.f32 %v348, %v415
        %417 = vmatmul.f32.gmra.mxu0 %v375
        %v418 = vpop.f32.mrf.mxu0
        %v419 = vadd.f32 %v351, %v418
        %420 = vmatmul.f32.gmra.mxu0 %v378
        %v421 = vpop.f32.mrf.mxu0
        %v422 = vadd.f32 %v354, %v421
        %423 = vmatmul.f32.gmra.mxu0 %v381
        %v424 = vpop.f32.mrf.mxu0
        %v425 = vadd.f32 %v357, %v424
        %426 = vmatmul.f32.gmra.mxu0 %v384
        %v427 = vpop.f32.mrf.mxu0
        %v428 = vadd.f32 %v360, %v427
        %429 = vmatmul.f32.gmra.mxu0 %v387
        %v430 = vpop.f32.mrf.mxu0
        %v431 = vadd.f32 %v363, %v430
        %432 = vmatmul.f32.gmra.mxu0 %v390
        %v433 = vpop.f32.mrf.mxu0
        %v434 = vadd.f32 %v366, %v433
        %435 = vmatmul.f32.gmra.mxu0 %v393
        %v436 = vpop.f32.mrf.mxu0
        %v437 = vadd.f32 %v369, %v436
        %438 = vdwg.mxu0
        %v439 = vld [vmem:[%s280 + $0x2] sm:$0xff]
        %v440 = vld [vmem:[%s280 + $0xa] sm:$0xff]
        %v441 = vld [vmem:[%s280 + $0x1a] sm:$0xff]
        %v442 = vld [vmem:[%s280 + $0x22] sm:$0xff]
        %v443 = vld [vmem:[%s280 + $0x32] sm:$0xff]
        %v444 = vld [vmem:[%s280 + $0x3a] sm:$0xff]
        %v445 = vld [vmem:[%s280 + $0x4a] sm:$0xff]
        %v446 = vld [vmem:[%s280 + $0x52] sm:$0xff]
        %s447 = scalar_lea.vmem %s1, 8
        %v448 = vld [vmem:[%s447] sm:$0xf]
        %v450 = vsel %vm301, %v439, 0
        %v453 = vsel %vm301, %v440, 0
        %v456 = vsel %vm301, %v441, 0
        %v459 = vsel %vm301, %v442, 0
        %v462 = vsel %vm301, %v443, 0
        %v465 = vsel %vm301, %v444, 0
        %v468 = vsel %vm301, %v445, 0
        %v471 = vsel %vm301, %v446, 0
        %v474 = vsel %vm326, %v448, 0
        %476 = vmatpush.msra.mxu0 0.0
        %477 = vmatpush.msra.mxu0 0.0
        %478 = vmatpush.msra.mxu0 0.0
        %479 = vmatpush.msra.mxu0 0.0
        %480 = vmatpush.msra.mxu0 0.0
        %481 = vmatpush.msra.mxu0 0.0
        %482 = vmatpush.msra.mxu0 0.0
        %483 = vmatpush.msra.mxu0 0.0
        %484 = vmatpush.msra.mxu0 0.0
        %485 = vmatpush.msra.mxu0 0.0
        %486 = vmatpush.msra.mxu0 0.0
        %487 = vmatpush.msra.mxu0 0.0
        %488 = vmatpush.msra.mxu0 0.0
        %489 = vmatpush.msra.mxu0 0.0
        %490 = vmatpush.msra.mxu0 0.0
        %491 = vmatpush.msra.mxu0 %v474
        %492 = vmatmul.f32.gmra.mxu0 %v450
        %v493 = vpop.f32.mrf.mxu0
        %v494 = vadd.f32 0.0, %v493
        %495 = vmatmul.f32.gmra.mxu0 %v453
        %v496 = vpop.f32.mrf.mxu0
        %v497 = vadd.f32 0.0, %v496
        %498 = vmatmul.f32.gmra.mxu0 %v456
        %v499 = vpop.f32.mrf.mxu0
        %v500 = vadd.f32 0.0, %v499
        %501 = vmatmul.f32.gmra.mxu0 %v459
        %v502 = vpop.f32.mrf.mxu0
        %v503 = vadd.f32 0.0, %v502
        %504 = vmatmul.f32.gmra.mxu0 %v462
        %v505 = vpop.f32.mrf.mxu0
        %v506 = vadd.f32 0.0, %v505
        %507 = vmatmul.f32.gmra.mxu0 %v465
        %v508 = vpop.f32.mrf.mxu0
        %v509 = vadd.f32 0.0, %v508
        %510 = vmatmul.f32.gmra.mxu0 %v468
        %v511 = vpop.f32.mrf.mxu0
        %v512 = vadd.f32 0.0, %v511
        %513 = vmatmul.f32.gmra.mxu0 %v471
        %v514 = vpop.f32.mrf.mxu0
        %v515 = vadd.f32 0.0, %v514
        %516 = vdwg.mxu0
        %v517 = vadd.f32 %v416, %v494
        %v518 = vadd.f32 %v419, %v497
        %v519 = vadd.f32 %v422, %v500
        %v520 = vadd.f32 %v425, %v503
        %v521 = vadd.f32 %v428, %v506
        %v522 = vadd.f32 %v431, %v509
        %v523 = vadd.f32 %v434, %v512
        %v524 = vadd.f32 %v437, %v515
        %v525 = vld [vmem:[%s2] sm:$0x1]
        %v527 = vperm.slane %v525, 0
        %v529 = vadd.f32 %v517, %v527
        %v530 = vadd.f32 %v518, %v527
        %v531 = vadd.f32 %v519, %v527
        %v532 = vadd.f32 %v520, %v527
        %v533 = vadd.f32 %v521, %v527
        %v534 = vadd.f32 %v522, %v527
        %v535 = vadd.f32 %v523, %v527
        %v536 = vadd.f32 %v524, %v527
        %v537 = vmax.f32 %v529, 0.0
        %v538 = vmax.f32 %v530, 0.0
        %v539 = vmax.f32 %v531, 0.0
        %v540 = vmax.f32 %v532, 0.0
        %v541 = vmax.f32 %v533, 0.0
        %v542 = vmax.f32 %v534, 0.0
        %v543 = vmax.f32 %v535, 0.0
        %v544 = vmax.f32 %v536, 0.0
        %v545 = vlaneseq
        %v546 = vshrl.u32 %v545, 7
        %v547 = vadd.s32 %v546, 8
        %v548 = vadd.s32 %v546, 16
        %v549 = vadd.s32 %v546, 24
        %v550 = vadd.s32 %v546, 32
        %v551 = vadd.s32 %v546, 40
        %v552 = vadd.s32 %v546, 48
        %v553 = vadd.s32 %v546, 56
        %vm554 = vcmp.lt.s32.totalorder %v546, 0
        %v555 = vsub.s32 0, %v546
        %v556 = vsel %vm554, %v555, %v546
        %v557 = vshrl.u32 %v556, 4
        %v558 = vand.u32 %v556, 15
        %v559 = vsub.s32 0, %v558
        %v560 = vsel %vm554, %v559, %v558
        %vm561 = vcmp.lt.s32.totalorder %v547, 0
        %v562 = vsub.s32 0, %v547
        %v563 = vsel %vm561, %v562, %v547
        %v564 = vshrl.u32 %v563, 4
        %v565 = vand.u32 %v563, 15
        %v566 = vsub.s32 0, %v565
        %v567 = vsel %vm561, %v566, %v565
        %vm568 = vcmp.lt.s32.totalorder %v548, 0
        %v569 = vsub.s32 0, %v548
        %v570 = vsel %vm568, %v569, %v548
        %v571 = vshrl.u32 %v570, 4
        %v572 = vand.u32 %v570, 15
        %v573 = vsub.s32 0, %v572
        %v574 = vsel %vm568, %v573, %v572
        %vm575 = vcmp.lt.s32.totalorder %v549, 0
        %v576 = vsub.s32 0, %v549
        %v577 = vsel %vm575, %v576, %v549
        %v578 = vshrl.u32 %v577, 4
        %v579 = vand.u32 %v577, 15
        %v580 = vsub.s32 0, %v579
        %v581 = vsel %vm575, %v580, %v579
        %vm582 = vcmp.lt.s32.totalorder %v550, 0
        %v583 = vsub.s32 0, %v550
        %v584 = vsel %vm582, %v583, %v550
        %v585 = vshrl.u32 %v584, 4
        %v586 = vand.u32 %v584, 15
        %v587 = vsub.s32 0, %v586
        %v588 = vsel %vm582, %v587, %v586
        %vm589 = vcmp.lt.s32.totalorder %v551, 0
        %v590 = vsub.s32 0, %v551
        %v591 = vsel %vm589, %v590, %v551
        %v592 = vshrl.u32 %v591, 4
        %v593 = vand.u32 %v591, 15
        %v594 = vsub.s32 0, %v593
        %v595 = vsel %vm589, %v594, %v593
        %vm596 = vcmp.lt.s32.totalorder %v552, 0
        %v597 = vsub.s32 0, %v552
        %v598 = vsel %vm596, %v597, %v552
        %v599 = vshrl.u32 %v598, 4
        %v600 = vand.u32 %v598, 15
        %v601 = vsub.s32 0, %v600
        %v602 = vsel %vm596, %v601, %v600
        %vm603 = vcmp.lt.s32.totalorder %v553, 0
        %v604 = vsub.s32 0, %v553
        %v605 = vsel %vm603, %v604, %v553
        %v606 = vshrl.u32 %v605, 4
        %v607 = vand.u32 %v605, 15
        %v608 = vsub.s32 0, %v607
        %v609 = vsel %vm603, %v608, %v607
        %vm610 = vcmp.ne.s32.totalorder %v560, 0
        %vm611 = vcmp.ne.s32.totalorder %v567, 0
        %vm612 = vcmp.ne.s32.totalorder %v574, 0
        %vm613 = vcmp.ne.s32.totalorder %v581, 0
        %vm614 = vcmp.ne.s32.totalorder %v588, 0
        %vm615 = vcmp.ne.s32.totalorder %v595, 0
        %vm616 = vcmp.ne.s32.totalorder %v602, 0
        %vm617 = vcmp.ne.s32.totalorder %v609, 0
        %vm618 = vcmp.lt.s32.totalorder %v560, 0
        %vm619 = vcmp.lt.s32.totalorder %v567, 0
        %vm620 = vcmp.lt.s32.totalorder %v574, 0
        %vm621 = vcmp.lt.s32.totalorder %v581, 0
        %vm622 = vcmp.lt.s32.totalorder %v588, 0
        %vm623 = vcmp.lt.s32.totalorder %v595, 0
        %vm624 = vcmp.lt.s32.totalorder %v602, 0
        %vm625 = vcmp.lt.s32.totalorder %v609, 0
        %vm626 = vmand %vm618, %vm610
        %vm627 = vmand %vm619, %vm611
        %vm628 = vmand %vm620, %vm612
        %vm629 = vmand %vm621, %vm613
        %vm630 = vmand %vm622, %vm614
        %vm631 = vmand %vm623, %vm615
        %vm632 = vmand %vm624, %vm616
        %vm633 = vmand %vm625, %vm617
        %v634 = vadd.s32 %v560, 16
        %v635 = vadd.s32 %v567, 16
        %v636 = vadd.s32 %v574, 16
        %v637 = vadd.s32 %v581, 16
        %v638 = vadd.s32 %v588, 16
        %v639 = vadd.s32 %v595, 16
        %v640 = vadd.s32 %v602, 16
        %v641 = vadd.s32 %v609, 16
        %v642 = vsel %vm626, %v634, %v560
        %v643 = vsel %vm627, %v635, %v567
        %v644 = vsel %vm628, %v636, %v574
        %v645 = vsel %vm629, %v637, %v581
        %v646 = vsel %vm630, %v638, %v588
        %v647 = vsel %vm631, %v639, %v595
        %v648 = vsel %vm632, %v640, %v602
        %v649 = vsel %vm633, %v641, %v609
        %vm650 = vcmp.eq.s32.totalorder %v642, 0
        %vm651 = vcmp.eq.s32.totalorder %v643, 0
        %vm652 = vcmp.eq.s32.totalorder %v644, 0
        %vm653 = vcmp.eq.s32.totalorder %v645, 0
        %vm654 = vcmp.eq.s32.totalorder %v646, 0
        %vm655 = vcmp.eq.s32.totalorder %v647, 0
        %vm656 = vcmp.eq.s32.totalorder %v648, 0
        %vm657 = vcmp.eq.s32.totalorder %v649, 0
        %v658 = vrot.slane %v537, 7
        %v659 = vrot.slane %v538, 7
        %v660 = vrot.slane %v539, 7
        %v661 = vrot.slane %v540, 7
        %v662 = vrot.slane %v541, 7
        %v663 = vrot.slane %v542, 7
        %v664 = vrot.slane %v543, 7
        %v665 = vrot.slane %v544, 7
        %vm666 = vcmp.lt.s32.totalorder %v546, 1
        %v667 = vsel %vm666, %v664, %v665
        %v668 = vsel %vm666, %v663, %v664
        %v669 = vsel %vm666, %v662, %v663
        %v670 = vsel %vm666, %v661, %v662
        %v671 = vsel %vm666, %v660, %v661
        %v672 = vsel %vm666, %v659, %v660
        %v673 = vsel %vm666, %v658, %v659
        %v674 = vsel %vm666, %v665, %v658
        %v675 = vsel %vm650, 0.0, %v674
        %v676 = vsel %vm651, 0.0, %v673
        %v677 = vsel %vm652, 0.0, %v672
        %v678 = vsel %vm653, 0.0, %v671
        %v679 = vsel %vm654, 0.0, %v670
        %v680 = vsel %vm655, 0.0, %v669
        %v681 = vsel %vm656, 0.0, %v668
        %v682 = vsel %vm657, 0.0, %v667
        %vm683 = vcmp.eq.s32.totalorder %v642, 15
        %vm684 = vcmp.eq.s32.totalorder %v643, 15
        %vm685 = vcmp.eq.s32.totalorder %v644, 15
        %vm686 = vcmp.eq.s32.totalorder %v645, 15
        %vm687 = vcmp.eq.s32.totalorder %v646, 15
        %vm688 = vcmp.eq.s32.totalorder %v647, 15
        %vm689 = vcmp.eq.s32.totalorder %v648, 15
        %vm690 = vcmp.eq.s32.totalorder %v649, 15
        %v691 = vrot.slane %v537, 1
        %v692 = vrot.slane %v538, 1
        %v693 = vrot.slane %v539, 1
        %v694 = vrot.slane %v540, 1
        %v695 = vrot.slane %v541, 1
        %v696 = vrot.slane %v542, 1
        %v697 = vrot.slane %v543, 1
        %v698 = vrot.slane %v544, 1
        %vm699 = vcmp.lt.s32.totalorder %v546, 7
        %v700 = vsel %vm699, %v697, %v698
        %v701 = vsel %vm699, %v696, %v697
        %v702 = vsel %vm699, %v695, %v696
        %v703 = vsel %vm699, %v694, %v695
        %v704 = vsel %vm699, %v693, %v694
        %v705 = vsel %vm699, %v692, %v693
        %v706 = vsel %vm699, %v691, %v692
        %v707 = vsel %vm699, %v698, %v691
        %v708 = vsel %vm683, 0.0, %v706
        %v709 = vsel %vm684, 0.0, %v705
        %v710 = vsel %vm685, 0.0, %v704
        %v711 = vsel %vm686, 0.0, %v703
        %v712 = vsel %vm687, 0.0, %v702
        %v713 = vsel %vm688, 0.0, %v701
        %v714 = vsel %vm689, 0.0, %v700
        %v715 = vsel %vm690, 0.0, %v707
        %v716 = vld [vmem:[%s3] sm:$0xff]
        %v717 = vld [vmem:[%s3 + $0x8] sm:$0xff]
        %v718 = vld [vmem:[%s3 + $0x10] sm:$0xff]
        %v719 = vld [vmem:[%s3 + $0x18] sm:$0xff]
        %s720 = scalar_lea.vmem %s3, 32
        %v721 = vld [vmem:[%s720] sm:$0xff]
        %v722 = vld [vmem:[%s720 + $0x8] sm:$0xff]
        %v723 = vld [vmem:[%s720 + $0x10] sm:$0xff]
        %v724 = vld [vmem:[%s720 + $0x18] sm:$0xff]
        %vm725 = vcmask 261120
        %v727 = vsel %vm725, %v537, 0
        %v730 = vsel %vm725, %v538, 0
        %v733 = vsel %vm725, %v539, 0
        %v736 = vsel %vm725, %v540, 0
        %v739 = vsel %vm725, %v541, 0
        %v742 = vsel %vm725, %v542, 0
        %v745 = vsel %vm725, %v543, 0
        %v748 = vsel %vm725, %v544, 0
        %750 = vmatpush.msra.mxu0 0.0
        %751 = vmatpush.msra.mxu0 0.0
        %752 = vmatpush.msra.mxu0 0.0
        %753 = vmatpush.msra.mxu0 0.0
        %754 = vmatpush.msra.mxu0 0.0
        %755 = vmatpush.msra.mxu0 0.0
        %756 = vmatpush.msra.mxu0 0.0
        %757 = vmatpush.msra.mxu0 0.0
        %758 = vmatpush.msra.mxu0 0.0
        %759 = vmatpush.msra.mxu0 0.0
        %760 = vmatpush.msra.mxu0 0.0
        %761 = vmatpush.msra.mxu0 0.0
        %762 = vmatpush.msra.mxu0 %v724
        %763 = vmatpush.msra.mxu0 %v723
        %764 = vmatpush.msra.mxu0 %v722
        %765 = vmatpush.msra.mxu0 %v721
        %766 = vmatmul.f32.gmra.mxu0 %v727
        %v767 = vpop.f32.mrf.mxu0
        %v768 = vadd.f32 0.0, %v767
        %769 = vmatmul.f32.gmra.mxu0 %v730
        %v770 = vpop.f32.mrf.mxu0
        %v771 = vadd.f32 0.0, %v770
        %772 = vmatmul.f32.gmra.mxu0 %v733
        %v773 = vpop.f32.mrf.mxu0
        %v774 = vadd.f32 0.0, %v773
        %775 = vmatmul.f32.gmra.mxu0 %v736
        %v776 = vpop.f32.mrf.mxu0
        %v777 = vadd.f32 0.0, %v776
        %778 = vmatmul.f32.gmra.mxu0 %v739
        %v779 = vpop.f32.mrf.mxu0
        %v780 = vadd.f32 0.0, %v779
        %781 = vmatmul.f32.gmra.mxu0 %v742
        %v782 = vpop.f32.mrf.mxu0
        %v783 = vadd.f32 0.0, %v782
        %784 = vmatmul.f32.gmra.mxu0 %v745
        %v785 = vpop.f32.mrf.mxu0
        %v786 = vadd.f32 0.0, %v785
        %787 = vmatmul.f32.gmra.mxu0 %v748
        %v788 = vpop.f32.mrf.mxu0
        %v789 = vadd.f32 0.0, %v788
        %790 = vdwg.mxu0
        %v792 = vsel %vm725, %v675, 0
        %v795 = vsel %vm725, %v676, 0
        %v798 = vsel %vm725, %v677, 0
        %v801 = vsel %vm725, %v678, 0
        %v804 = vsel %vm725, %v679, 0
        %v807 = vsel %vm725, %v680, 0
        %v810 = vsel %vm725, %v681, 0
        %v813 = vsel %vm725, %v682, 0
        %815 = vmatpush.msra.mxu0 0.0
        %816 = vmatpush.msra.mxu0 0.0
        %817 = vmatpush.msra.mxu0 0.0
        %818 = vmatpush.msra.mxu0 0.0
        %819 = vmatpush.msra.mxu0 0.0
        %820 = vmatpush.msra.mxu0 0.0
        %821 = vmatpush.msra.mxu0 0.0
        %822 = vmatpush.msra.mxu0 0.0
        %823 = vmatpush.msra.mxu0 0.0
        %824 = vmatpush.msra.mxu0 0.0
        %825 = vmatpush.msra.mxu0 0.0
        %826 = vmatpush.msra.mxu0 0.0
        %827 = vmatpush.msra.mxu0 %v719
        %828 = vmatpush.msra.mxu0 %v718
        %829 = vmatpush.msra.mxu0 %v717
        %830 = vmatpush.msra.mxu0 %v716
        %831 = vmatmul.f32.gmra.mxu0 %v792
        %v832 = vpop.f32.mrf.mxu0
        %v833 = vadd.f32 %v768, %v832
        %834 = vmatmul.f32.gmra.mxu0 %v795
        %v835 = vpop.f32.mrf.mxu0
        %v836 = vadd.f32 %v771, %v835
        %837 = vmatmul.f32.gmra.mxu0 %v798
        %v838 = vpop.f32.mrf.mxu0
        %v839 = vadd.f32 %v774, %v838
        %840 = vmatmul.f32.gmra.mxu0 %v801
        %v841 = vpop.f32.mrf.mxu0
        %v842 = vadd.f32 %v777, %v841
        %843 = vmatmul.f32.gmra.mxu0 %v804
        %v844 = vpop.f32.mrf.mxu0
        %v845 = vadd.f32 %v780, %v844
        %846 = vmatmul.f32.gmra.mxu0 %v807
        %v847 = vpop.f32.mrf.mxu0
        %v848 = vadd.f32 %v783, %v847
        %849 = vmatmul.f32.gmra.mxu0 %v810
        %v850 = vpop.f32.mrf.mxu0
        %v851 = vadd.f32 %v786, %v850
        %852 = vmatmul.f32.gmra.mxu0 %v813
        %v853 = vpop.f32.mrf.mxu0
        %v854 = vadd.f32 %v789, %v853
        %855 = vdwg.mxu0
        %s856 = scalar_lea.vmem %s3, 64
        %v857 = vld [vmem:[%s856] sm:$0xff]
        %v858 = vld [vmem:[%s856 + $0x8] sm:$0xff]
        %v859 = vld [vmem:[%s856 + $0x10] sm:$0xff]
        %v860 = vld [vmem:[%s856 + $0x18] sm:$0xff]
        %v862 = vsel %vm725, %v708, 0
        %v865 = vsel %vm725, %v709, 0
        %v868 = vsel %vm725, %v710, 0
        %v871 = vsel %vm725, %v711, 0
        %v874 = vsel %vm725, %v712, 0
        %v877 = vsel %vm725, %v713, 0
        %v880 = vsel %vm725, %v714, 0
        %v883 = vsel %vm725, %v715, 0
        %885 = vmatpush.msra.mxu0 0.0
        %886 = vmatpush.msra.mxu0 0.0
        %887 = vmatpush.msra.mxu0 0.0
        %888 = vmatpush.msra.mxu0 0.0
        %889 = vmatpush.msra.mxu0 0.0
        %890 = vmatpush.msra.mxu0 0.0
        %891 = vmatpush.msra.mxu0 0.0
        %892 = vmatpush.msra.mxu0 0.0
        %893 = vmatpush.msra.mxu0 0.0
        %894 = vmatpush.msra.mxu0 0.0
        %895 = vmatpush.msra.mxu0 0.0
        %896 = vmatpush.msra.mxu0 0.0
        %897 = vmatpush.msra.mxu0 %v860
        %898 = vmatpush.msra.mxu0 %v859
        %899 = vmatpush.msra.mxu0 %v858
        %900 = vmatpush.msra.mxu0 %v857
        %901 = vmatmul.f32.gmra.mxu0 %v862
        %v902 = vpop.f32.mrf.mxu0
        %v903 = vadd.f32 0.0, %v902
        %904 = vmatmul.f32.gmra.mxu0 %v865
        %v905 = vpop.f32.mrf.mxu0
        %v906 = vadd.f32 0.0, %v905
        %907 = vmatmul.f32.gmra.mxu0 %v868
        %v908 = vpop.f32.mrf.mxu0
        %v909 = vadd.f32 0.0, %v908
        %910 = vmatmul.f32.gmra.mxu0 %v871
        %v911 = vpop.f32.mrf.mxu0
        %v912 = vadd.f32 0.0, %v911
        %913 = vmatmul.f32.gmra.mxu0 %v874
        %v914 = vpop.f32.mrf.mxu0
        %v915 = vadd.f32 0.0, %v914
        %916 = vmatmul.f32.gmra.mxu0 %v877
        %v917 = vpop.f32.mrf.mxu0
        %v918 = vadd.f32 0.0, %v917
        %919 = vmatmul.f32.gmra.mxu0 %v880
        %v920 = vpop.f32.mrf.mxu0
        %v921 = vadd.f32 0.0, %v920
        %922 = vmatmul.f32.gmra.mxu0 %v883
        %v923 = vpop.f32.mrf.mxu0
        %v924 = vadd.f32 0.0, %v923
        %925 = vdwg.mxu0
        %v926 = vadd.f32 %v833, %v903
        %v927 = vadd.f32 %v836, %v906
        %v928 = vadd.f32 %v839, %v909
        %v929 = vadd.f32 %v842, %v912
        %v930 = vadd.f32 %v845, %v915
        %v931 = vadd.f32 %v848, %v918
        %v932 = vadd.f32 %v851, %v921
        %v933 = vadd.f32 %v854, %v924
        %v934 = vld [vmem:[%s4] sm:$0x1]
        %v936 = vperm.slane %v934, 0
        %v938 = vadd.f32 %v926, %v936
        %v939 = vadd.f32 %v927, %v936
        %v940 = vadd.f32 %v928, %v936
        %v941 = vadd.f32 %v929, %v936
        %v942 = vadd.f32 %v930, %v936
        %v943 = vadd.f32 %v931, %v936
        %v944 = vadd.f32 %v932, %v936
        %v945 = vadd.f32 %v933, %v936
        %v946 = vmax.f32 %v938, 0.0
        %v947 = vmax.f32 %v939, 0.0
        %v948 = vmax.f32 %v940, 0.0
        %v949 = vmax.f32 %v941, 0.0
        %v950 = vmax.f32 %v942, 0.0
        %v951 = vmax.f32 %v943, 0.0
        %v952 = vmax.f32 %v944, 0.0
        %v953 = vmax.f32 %v945, 0.0
        %vm954 = vcmask 523264
        %v955 = vsel %vm954, %v946, 0.0
        %v956 = vsel %vm954, %v947, 0.0
        %v957 = vadd.f32 %v955, %v956
        %v958 = vrot.slane %v957, 4
        %v959 = vadd.f32 %v957, %v958
        %v960 = vrot.slane %v959, 2
        %v961 = vadd.f32 %v959, %v960
        %v962 = vrot.slane %v961, 1
        %v963 = vadd.f32 %v961, %v962
        %v964 = vsel %vm954, %v948, 0.0
        %v965 = vsel %vm954, %v949, 0.0
        %v966 = vadd.f32 %v964, %v965
        %v967 = vrot.slane %v966, 4
        %v968 = vadd.f32 %v966, %v967
        %v969 = vrot.slane %v968, 2
        %v970 = vadd.f32 %v968, %v969
        %v971 = vrot.slane %v970, 1
        %v972 = vadd.f32 %v970, %v971
        %v973 = vsel %vm954, %v950, 0.0
        %v974 = vsel %vm954, %v951, 0.0
        %v975 = vadd.f32 %v973, %v974
        %v976 = vrot.slane %v975, 4
        %v977 = vadd.f32 %v975, %v976
        %v978 = vrot.slane %v977, 2
        %v979 = vadd.f32 %v977, %v978
        %v980 = vrot.slane %v979, 1
        %v981 = vadd.f32 %v979, %v980
        %v982 = vsel %vm954, %v952, 0.0
        %v983 = vsel %vm954, %v953, 0.0
        %v984 = vadd.f32 %v982, %v983
        %v985 = vrot.slane %v984, 4
        %v986 = vadd.f32 %v984, %v985
        %v987 = vrot.slane %v986, 2
        %v988 = vadd.f32 %v986, %v987
        %v989 = vrot.slane %v988, 1
        %v990 = vadd.f32 %v988, %v989
        %v991 = vmul.f32 %v963, 0.0625
        %v992 = vmul.f32 %v972, 0.0625
        %v993 = vmul.f32 %v981, 0.0625
        %v994 = vmul.f32 %v990, 0.0625
        %v995 = vld [vmem:[%s5] sm:$0x1]
        %v997 = vperm.slane %v995, 0
        %v999 = vmul.f32 %v991, %v997
        %v1000 = vmul.f32 %v992, %v997
        %v1001 = vmul.f32 %v993, %v997
        %v1002 = vmul.f32 %v994, %v997
        %v1007 = vrot.slane %v1000, 7
        %vm1008 = vcmask 1041409
        %v1009 = vsel %vm1008, %v1007, %v999
        %v1010 = vrot.slane %v1001, 6
        %vm1011 = vcmask 1042434
        %v1012 = vsel %vm1011, %v1010, %v1009
        %v1013 = vrot.slane %v1002, 5
        %vm1014 = vcmask 1043459
        %v1015 = vsel %vm1014, %v1013, %v1012
        %vm1017 = vcmask 519168
        %v1018 = vsel %vm1017, %v1015, 0.0
        %1019 = vadd.xlane.f32.xlu0 %v1018
        %v1020 = vpop.xlane.xlu0 %1019
        %s1021 = sld [smem:[#allocation2]]
        %v1022 = vstv %s1021
        %v1023 = vadd.f32 %v1020, %v1022
        %v1025 = vlaneseq
        %v1026 = vand.u32 %v1025, 127
        %v1027 = vperm.slane %v1023, %v1026
        %vm1029 = vcmask 24576
        %1030 = vst.msk [vmem:[%s274] sm:$0x1] %vm1029, %v1027
        %s1031 = sand.u32 %s182, 1
        %s1032 = scalar_lea.sflag [#allocation4], %s1031
        %s1033 = sand.u32 %s182, 1
        %s1034 = scalar_lea.vmem [#allocation3], %s1033
        // Predicated region
        $region49: #{tpu_custom_call.1} parent=47 // pred_check
          %p1035 = pneg %p192
        $region50: #{tpu_custom_call.1} parent=47 // pred_check_branch
          %1037 = sbr.rel (%p1035) target = $region52
        $region51: #{tpu_custom_call.1} parent=47 // pred_region
          %1039 = vsyncadd %s1032, 0
          %s1040 = scalar_lea.hbm %s7, %s22
          %s1042 = sshll.u32 %s1034, 4
          %s1043 = int_to_ptr.vmem [resolvable:$true] %s1042
          %s1044 = sshll.u32 %s1040, 4
          %s1045 = int_to_ptr.hbm [resolvable:$true] %s1044
          %1047 = dma.vmem_to_hbm [thread:$0]  %s1043, 16, %s1045, %s1032
        $region52: #{tpu_custom_call.1} parent=47 // pred_fallthru
          _
      $region48: #{tpu_custom_call.1} parent=5 // pred_fallthru
        _
      %p1048 = scmp.le.s32.totalorder 2, %s17
      // Predicated region
      $region53: #{tpu_custom_call.1} parent=5 // pred_check
        %p1049 = pneg %p1048
      $region54: #{tpu_custom_call.1} parent=5 // pred_check_branch
        %1051 = sbr.rel (%p1049) target = $region56
      $region55: #{tpu_custom_call.1} parent=5 // pred_region
        %s1052 = ssub.s32 %s17, 2
        // Predicated region
        $region57: #{tpu_custom_call.1} parent=55 // pred_check
          %p1053 = pneg %p198
        $region58: #{tpu_custom_call.1} parent=55 // pred_check_branch
          %1055 = sbr.rel (%p1053) target = $region60
        $region59: #{tpu_custom_call.1} parent=55 // pred_region
          %s1056 = sand.u32 %s183, 1
          %s1057 = scalar_lea.sflag [#allocation4], %s1056
          %s1058 = sand.u32 %s183, 1
          %s1059 = scalar_lea.vmem [#allocation3], %s1058
          %1061 = dma.done %s1057, 16
        $region60: #{tpu_custom_call.1} parent=55 // pred_fallthru
          _
      $region56: #{tpu_custom_call.1} parent=5 // pred_fallthru
        _
    $region6: #{tpu_custom_call.1} parent=1 // loop_footer
      %s21 = sadd.s32 1, %s17
    $region7: #{tpu_custom_call.1} parent=1 // loop_footer_branch
      %16 = sbr.rel target = $region3
    $region8: #{tpu_custom_call.1} parent=1 // loop_exit
      _
    %1062 = vsyncpa [#allocation4], 1
    %s1063 = scalar_lea.sflag [#allocation4], 1
    %1064 = vsyncpa %s1063, 1

</llo_original>
